<compile_context>
chip_gen: v7x
topology: tpu7x:2x2x1
jax: 0.10.0
libtpu: 0.0.40
codegen_flags: <defaults>
</compile_context>

<pallas_src>
import numpy as np
import jax
import jax.numpy as jnp
from jax.experimental import pallas as pl
from jax.experimental.pallas import tpu as pltpu

EPS = 1e-6
_LANES = 128
_SUBLANES = 8
_MAX_TILE_ROWS = 2048  # 2048 rows x 128 lanes x 4 B = 1 MiB per input per block


def _round_up(x, m):
    return ((x + m - 1) // m) * m


def _sublane_rows(dtype):
    """Row-tile granularity so sub-32-bit dtypes stay sublane-packed."""
    return _SUBLANES * max(1, 4 // jnp.dtype(dtype).itemsize)


def _ce_stats_kernel(pred_ref, lab_ref, out_ref, acc_ref):
    """Accumulate per-(image, split) CE statistics across row tiles.

    pred_ref/lab_ref: (1, TR, 128) native dtype (upcast in-register)
    out_ref:          (1, 1, 8, 128) f32, accumulator-resident across the r axis
    acc_ref:          (4, 8, 128) f32 VMEM scratch
                      [0]=sum_pos, [1]=cnt_pos, [2]=sum_neg, [3]=cnt_neg

    Padding rows carry label == -1.0, so they are neither positive (>0) nor
    negative (==0) and drop out of every accumulator without a validity mask.
    """
    r = pl.program_id(2)
    tr = pred_ref.shape[1]

    @pl.when(r == 0)
    def _():
        acc_ref[...] = jnp.zeros_like(acc_ref)

    p = pred_ref[0].astype(jnp.float32)   # (TR, 128)
    l = lab_ref[0].astype(jnp.float32)    # (TR, 128)

    pos = l > 0.0
    neg = l == 0.0

    p_c = jnp.clip(p, EPS, 1.0 - EPS)
    # Single log per element: log(p) for positives, log(1-p) for negatives.
    q = jnp.where(pos, p_c, 1.0 - p_c)
    w = jnp.where(pos, l, 1.0)
    term = -jnp.log(q) * w

    def lane_partial(x):  # (TR, 128) -> (8, 128); pure VPU adds, no XLU per tile
        return x.reshape(tr // _SUBLANES, _SUBLANES, _LANES).sum(axis=0)

    acc_ref[0] += lane_partial(jnp.where(pos, term, 0.0))
    acc_ref[1] += lane_partial(pos.astype(jnp.float32))
    acc_ref[2] += lane_partial(jnp.where(neg, term, 0.0))
    acc_ref[3] += lane_partial(neg.astype(jnp.float32))

    @pl.when(r == pl.num_programs(2) - 1)
    def _():
        sum_pos = jnp.sum(acc_ref[0])
        cnt_pos = jnp.sum(acc_ref[1])
        sum_neg = jnp.sum(acc_ref[2])
        cnt_neg = jnp.sum(acc_ref[3])
        rowi = jax.lax.broadcasted_iota(jnp.int32, (_SUBLANES, _LANES), 0)
        tile = (jnp.where(rowi == 0, sum_pos, 0.0)
                + jnp.where(rowi == 1, cnt_pos, 0.0)
                + jnp.where(rowi == 2, sum_neg, 0.0)
                + jnp.where(rowi == 3, cnt_neg, 0.0))
        out_ref[...] = tile[None, None]


def _per_image_stats(pred3, lab3, *, n_splits, rows_per_block):
    """pred3/lab3: (B, R, 128) with R == n_splits * rt * rows_per_block.

    Returns (B, n_splits, 8, 128) f32 packed stats.
    """
    B, R, _ = pred3.shape
    tr = rows_per_block
    rt = R // (n_splits * tr)

    n_elems = B * R * _LANES
    bytes_in = n_elems * (jnp.dtype(pred3.dtype).itemsize
                          + jnp.dtype(lab3.dtype).itemsize)
    cost = pl.CostEstimate(
        flops=18 * n_elems,
        transcendentals=n_elems,
        bytes_accessed=bytes_in + B * n_splits * _SUBLANES * _LANES * 4,
    )

    return pl.pallas_call(
        _ce_stats_kernel,
        out_shape=jax.ShapeDtypeStruct((B, n_splits, _SUBLANES, _LANES),
                                       jnp.float32),
        grid=(B, n_splits, rt),
        in_specs=[
            pl.BlockSpec((1, tr, _LANES), lambda b, s, r: (b, s * rt + r, 0)),
            pl.BlockSpec((1, tr, _LANES), lambda b, s, r: (b, s * rt + r, 0)),
        ],
        out_specs=pl.BlockSpec((1, 1, _SUBLANES, _LANES),
                               lambda b, s, r: (b, s, 0, 0)),
        scratch_shapes=[pltpu.VMEM((4, _SUBLANES, _LANES), jnp.float32)],
        compiler_params=pltpu.CompilerParams(
            dimension_semantics=("parallel", "parallel", "arbitrary"),
            vmem_limit_bytes=32 * 1024 * 1024),
        cost_estimate=cost,
    )(pred3, lab3)


class CrossEntropyPallas:
    def __init__(self):
        # nn.Parameter(torch.Tensor([1.0])) x2 — unused in forward, kept for parity.
        self.weight1 = jnp.array([1.0], dtype=jnp.float32)
        self.weight2 = jnp.array([1.0], dtype=jnp.float32)

    def loss(self, pred, labels):
        """total_loss, computed with the Pallas kernel (jit-able)."""
        B = pred.shape[0]
        pred2 = pred.reshape(B, -1)       # keep native dtype; kernel upcasts
        lab2 = labels.reshape(B, -1)
        # The -1.0 padding sentinel needs a signed / floating label dtype.
        if not (jnp.issubdtype(lab2.dtype, jnp.floating)
                or jnp.issubdtype(lab2.dtype, jnp.signedinteger)):
            lab2 = lab2.astype(jnp.float32)
        n = pred2.shape[1]

        unit_rows = max(_sublane_rows(pred2.dtype), _sublane_rows(lab2.dtype))
        r0 = pl.cdiv(n, _LANES)                 # rows of 128 lanes needed

        # v7x megacore: give the scheduler an even number of parallel units
        # when B is odd by splitting each image's row axis in two.
        n_splits = 2 if (B % 2 == 1 and r0 >= 2 * unit_rows) else 1

        rt = pl.cdiv(r0, n_splits * _MAX_TILE_ROWS)        # row-blocks / split
        tr = _round_up(pl.cdiv(r0, n_splits * rt), unit_rows)  # rows / block
        r_pad = n_splits * rt * tr
        n_pad = r_pad * _LANES

        # Pad only when needed; padded labels get the -1.0 sentinel so the
        # kernel needs no per-tile validity mask.  Common case: no copy.
        if n_pad != n:
            pred2 = jnp.pad(pred2, ((0, 0), (0, n_pad - n)))
            lab2 = jnp.pad(lab2, ((0, 0), (0, n_pad - n)), constant_values=-1)

        stats = _per_image_stats(pred2.reshape(B, r_pad, _LANES),
                                 lab2.reshape(B, r_pad, _LANES),
                                 n_splits=n_splits, rows_per_block=tr)
        sums = stats.sum(axis=1)            # combine megacore splits
        sum_pos = sums[:, 0, 0]
        cnt_pos = sums[:, 1, 0]
        sum_neg = sums[:, 2, 0]
        cnt_neg = sums[:, 3, 0]
        # NOTE: images with zero positives or zero negatives yield NaN, matching
        # the PyTorch reference (mean of an empty tensor).
        per_image = sum_pos / cnt_pos + sum_neg / cnt_neg
        total_loss = jnp.sum(per_image) / B  # cross_entropy_per_image averaging
        return 1.0 * total_loss

    def forward(self, pred, labels):
        """Full forward: (total_loss, |1 - pred[labels>0]|, pred[labels==0])."""
        total_loss = self.loss(pred, labels)
        # TODO(synk): dynamic-shape boolean gathers (pred[labels>0], pred[labels==0])
        # cannot be expressed in a fixed-shape Pallas kernel; compacted host-side.
        pred_np = np.asarray(pred).reshape(-1)
        lab_np = np.asarray(labels).reshape(-1)
        pred_pos = np.abs(1.0 - pred_np[lab_np > 0])
        pred_neg = pred_np[lab_np == 0]
        return total_loss, pred_pos, pred_neg


def _reference_loss(pred_np, lab_np):
    B = pred_np.shape[0]
    total = 0.0
    for i in range(B):
        p = pred_np[i].reshape(-1)
        l = lab_np[i].reshape(-1)
        pp = np.clip(p[l > 0], EPS, 1.0 - EPS)
        pn = np.clip(p[l == 0], EPS, 1.0 - EPS)
        w = l[l > 0]
        total += (-np.log(pp) * w).mean() + (-np.log(1.0 - pn)).mean()
    return total / B


if __name__ == "__main__":
    key = jax.random.PRNGKey(0)
    k1, k2 = jax.random.split(key)

    B, C, H, W = 2, 4, 16, 16  # NCHW, like the PyTorch module's inputs
    # pred: probabilities in (0, 1)
    pred = jax.nn.sigmoid(jax.random.normal(k1, (B, C, H, W), dtype=jnp.float32))
    # labels: positive annotation weights for ~40% of pixels, zero elsewhere
    raw = jax.random.uniform(k2, (B, C, H, W), dtype=jnp.float32)
    labels = jnp.where(raw > 0.6, raw, 0.0)

    model = CrossEntropyPallas()
    total_loss, pred_pos, pred_neg = model.forward(pred, labels)
    total_loss = jax.block_until_ready(total_loss)

    # correctness check against a plain numpy reference
    ref = _reference_loss(np.asarray(pred), np.asarray(labels))
    assert np.allclose(float(total_loss), ref, rtol=1e-5, atol=1e-5), (
        float(total_loss), ref)
    assert pred_pos.shape[0] + pred_neg.shape[0] == B * C * H * W

    # exercise the odd-batch / megacore-split path once as well
    loss_b1 = jax.block_until_ready(model.loss(pred[:1], labels[:1]))
    ref_b1 = _reference_loss(np.asarray(pred[:1]), np.asarray(labels[:1]))
    assert np.allclose(float(loss_b1), ref_b1, rtol=1e-5, atol=1e-5), (
        float(loss_b1), ref_b1)

    print("KERNEL_OK")
</pallas_src>

<mosaic_0001>
module attributes {stable_mosaic.version = 11 : i64} {
  func.func @_ce_stats_kernel(%arg0: i32, %arg1: i32, %arg2: i32, %arg3: memref<1x8x128xf32, #tpu.memory_space<vmem>>, %arg4: memref<1x8x128xf32, #tpu.memory_space<vmem>>, %arg5: memref<1x1x8x128xf32, #tpu.memory_space<vmem>>, %arg6: memref<4x8x128xf32, #tpu.memory_space<vmem>>) attributes {dimension_semantics = [#tpu.dimension_semantics<parallel>, #tpu.dimension_semantics<parallel>, #tpu.dimension_semantics<arbitrary>], iteration_bounds = array<i64: 2, 1, 1>, scalar_prefetch = 0 : i64, scratch_operands = 1 : i64, tpu.core_type = #tpu.core_type<tc>, window_params = [{transform_indices = @transform_0, window_bounds = array<i64: 1, 8, 128>}, {transform_indices = @transform_1, window_bounds = array<i64: 1, 8, 128>}, {transform_indices = @transform_2, window_bounds = array<i64: 1, 1, 8, 128>}]} {
    %c0_i32 = arith.constant 0 : i32
    %0 = arith.cmpi eq, %arg2, %c0_i32 : i32
    %1 = arith.extui %0 : i1 to i32
    %c0_i32_0 = arith.constant 0 : i32
    %2 = arith.cmpi ne, %1, %c0_i32_0 : i32
    scf.if %2 {
      %cst_41 = arith.constant 0.000000e+00 : f32
      %67 = vector.broadcast %cst_41 : f32 to vector<4x8x128xf32>
      %c0_42 = arith.constant 0 : index
      %c0_43 = arith.constant 0 : index
      %c0_44 = arith.constant 0 : index
      %68 = vector.load %arg6[%c0_42, %c0_43, %c0_44] : memref<4x8x128xf32, #tpu.memory_space<vmem>>, vector<4x8x128xf32>
      tpu.vector_store %arg6[%c0_42, %c0_43, %c0_44], %67 {strides = array<i32>} : memref<4x8x128xf32, #tpu.memory_space<vmem>>, vector<4x8x128xf32>,
    } else {
    }
    %c0 = arith.constant 0 : index
    %c0_1 = arith.constant 0 : index
    %c0_2 = arith.constant 0 : index
    %3 = vector.load %arg3[%c0, %c0_1, %c0_2] : memref<1x8x128xf32, #tpu.memory_space<vmem>>, vector<1x8x128xf32>
    %4 = vector.shape_cast %3 : vector<1x8x128xf32> to vector<8x128xf32>
    %c0_3 = arith.constant 0 : index
    %c0_4 = arith.constant 0 : index
    %c0_5 = arith.constant 0 : index
    %5 = vector.load %arg4[%c0_3, %c0_4, %c0_5] : memref<1x8x128xf32, #tpu.memory_space<vmem>>, vector<1x8x128xf32>
    %6 = vector.shape_cast %5 : vector<1x8x128xf32> to vector<8x128xf32>
    %cst = arith.constant 0.000000e+00 : f32
    %7 = vector.broadcast %cst : f32 to vector<8x128xf32>
    %8 = arith.cmpf ogt, %6, %7 : vector<8x128xf32>
    %cst_6 = arith.constant 0.000000e+00 : f32
    %9 = vector.broadcast %cst_6 : f32 to vector<8x128xf32>
    %10 = arith.cmpf oeq, %6, %9 : vector<8x128xf32>
    %cst_7 = arith.constant 9.99999997E-7 : f32
    %cst_8 = arith.constant 0.999998986 : f32
    %11 = vector.broadcast %cst_7 : f32 to vector<8x128xf32>
    %12 = arith.maximumf %11, %4 : vector<8x128xf32>
    %13 = vector.broadcast %cst_8 : f32 to vector<8x128xf32>
    %14 = arith.minimumf %13, %12 : vector<8x128xf32>
    %cst_9 = arith.constant 1.000000e+00 : f32
    %15 = vector.broadcast %cst_9 : f32 to vector<8x128xf32>
    %16 = arith.subf %15, %14 : vector<8x128xf32>
    %17 = arith.select %8, %14, %16 : vector<8x128xi1>, vector<8x128xf32>
    %cst_10 = arith.constant 1.000000e+00 : f32
    %18 = vector.broadcast %cst_10 : f32 to vector<8x128xf32>
    %19 = arith.select %8, %6, %18 : vector<8x128xi1>, vector<8x128xf32>
    %20 = math.log %17 : vector<8x128xf32>
    %cst_11 = arith.constant 0.000000e+00 : f32
    %21 = vector.broadcast %cst_11 : f32 to vector<8x128xf32>
    %22 = arith.subf %21, %20 : vector<8x128xf32>
    %23 = arith.mulf %22, %19 : vector<8x128xf32>
    %c0_12 = arith.constant 0 : index
    %c0_13 = arith.constant 0 : index
    %c0_14 = arith.constant 0 : index
    %24 = vector.load %arg6[%c0_12, %c0_13, %c0_14] : memref<4x8x128xf32, #tpu.memory_space<vmem>>, vector<1x8x128xf32>
    %25 = vector.shape_cast %24 : vector<1x8x128xf32> to vector<8x128xf32>
    %cst_15 = arith.constant 0.000000e+00 : f32
    %26 = vector.broadcast %cst_15 : f32 to vector<8x128xf32>
    %27 = arith.select %8, %23, %26 : vector<8x128xi1>, vector<8x128xf32>
    %28 = vector.shape_cast %27 : vector<8x128xf32> to vector<1x8x128xf32>
    %cst_16 = arith.constant dense<0.000000e+00> : vector<8x128xf32>
    %29 = vector.multi_reduction <add>, %28, %cst_16 [0] : vector<1x8x128xf32> to vector<8x128xf32>
    %30 = arith.addf %25, %29 : vector<8x128xf32>
    %c0_17 = arith.constant 0 : index
    %c0_18 = arith.constant 0 : index
    %c0_19 = arith.constant 0 : index
    %31 = vector.load %arg6[%c0_17, %c0_18, %c0_19] : memref<4x8x128xf32, #tpu.memory_space<vmem>>, vector<1x8x128xf32>
    %32 = vector.shape_cast %31 : vector<1x8x128xf32> to vector<8x128xf32>
    %33 = vector.shape_cast %30 : vector<8x128xf32> to vector<1x8x128xf32>
    tpu.vector_store %arg6[%c0_17, %c0_18, %c0_19], %33 {strides = array<i32>} : memref<4x8x128xf32, #tpu.memory_space<vmem>>, vector<1x8x128xf32>,
    %c1 = arith.constant 1 : index
    %c0_20 = arith.constant 0 : index
    %c0_21 = arith.constant 0 : index
    %34 = vector.load %arg6[%c1, %c0_20, %c0_21] : memref<4x8x128xf32, #tpu.memory_space<vmem>>, vector<1x8x128xf32>
    %35 = vector.shape_cast %34 : vector<1x8x128xf32> to vector<8x128xf32>
    %36 = arith.extui %8 : vector<8x128xi1> to vector<8x128xi32>
    %37 = arith.sitofp %36 : vector<8x128xi32> to vector<8x128xf32>
    %38 = vector.shape_cast %37 : vector<8x128xf32> to vector<1x8x128xf32>
    %cst_22 = arith.constant dense<0.000000e+00> : vector<8x128xf32>
    %39 = vector.multi_reduction <add>, %38, %cst_22 [0] : vector<1x8x128xf32> to vector<8x128xf32>
    %40 = arith.addf %35, %39 : vector<8x128xf32>
    %c1_23 = arith.constant 1 : index
    %c0_24 = arith.constant 0 : index
    %c0_25 = arith.constant 0 : index
    %41 = vector.load %arg6[%c1_23, %c0_24, %c0_25] : memref<4x8x128xf32, #tpu.memory_space<vmem>>, vector<1x8x128xf32>
    %42 = vector.shape_cast %41 : vector<1x8x128xf32> to vector<8x128xf32>
    %43 = vector.shape_cast %40 : vector<8x128xf32> to vector<1x8x128xf32>
    tpu.vector_store %arg6[%c1_23, %c0_24, %c0_25], %43 {strides = array<i32>} : memref<4x8x128xf32, #tpu.memory_space<vmem>>, vector<1x8x128xf32>,
    %c2 = arith.constant 2 : index
    %c0_26 = arith.constant 0 : index
    %c0_27 = arith.constant 0 : index
    %44 = vector.load %arg6[%c2, %c0_26, %c0_27] : memref<4x8x128xf32, #tpu.memory_space<vmem>>, vector<1x8x128xf32>
    %45 = vector.shape_cast %44 : vector<1x8x128xf32> to vector<8x128xf32>
    %cst_28 = arith.constant 0.000000e+00 : f32
    %46 = vector.broadcast %cst_28 : f32 to vector<8x128xf32>
    %47 = arith.select %10, %23, %46 : vector<8x128xi1>, vector<8x128xf32>
    %48 = vector.shape_cast %47 : vector<8x128xf32> to vector<1x8x128xf32>
    %cst_29 = arith.constant dense<0.000000e+00> : vector<8x128xf32>
    %49 = vector.multi_reduction <add>, %48, %cst_29 [0] : vector<1x8x128xf32> to vector<8x128xf32>
    %50 = arith.addf %45, %49 : vector<8x128xf32>
    %c2_30 = arith.constant 2 : index
    %c0_31 = arith.constant 0 : index
    %c0_32 = arith.constant 0 : index
    %51 = vector.load %arg6[%c2_30, %c0_31, %c0_32] : memref<4x8x128xf32, #tpu.memory_space<vmem>>, vector<1x8x128xf32>
    %52 = vector.shape_cast %51 : vector<1x8x128xf32> to vector<8x128xf32>
    %53 = vector.shape_cast %50 : vector<8x128xf32> to vector<1x8x128xf32>
    tpu.vector_store %arg6[%c2_30, %c0_31, %c0_32], %53 {strides = array<i32>} : memref<4x8x128xf32, #tpu.memory_space<vmem>>, vector<1x8x128xf32>,
    %c3 = arith.constant 3 : index
    %c0_33 = arith.constant 0 : index
    %c0_34 = arith.constant 0 : index
    %54 = vector.load %arg6[%c3, %c0_33, %c0_34] : memref<4x8x128xf32, #tpu.memory_space<vmem>>, vector<1x8x128xf32>
    %55 = vector.shape_cast %54 : vector<1x8x128xf32> to vector<8x128xf32>
    %56 = arith.extui %10 : vector<8x128xi1> to vector<8x128xi32>
    %57 = arith.sitofp %56 : vector<8x128xi32> to vector<8x128xf32>
    %58 = vector.shape_cast %57 : vector<8x128xf32> to vector<1x8x128xf32>
    %cst_35 = arith.constant dense<0.000000e+00> : vector<8x128xf32>
    %59 = vector.multi_reduction <add>, %58, %cst_35 [0] : vector<1x8x128xf32> to vector<8x128xf32>
    %60 = arith.addf %55, %59 : vector<8x128xf32>
    %c3_36 = arith.constant 3 : index
    %c0_37 = arith.constant 0 : index
    %c0_38 = arith.constant 0 : index
    %61 = vector.load %arg6[%c3_36, %c0_37, %c0_38] : memref<4x8x128xf32, #tpu.memory_space<vmem>>, vector<1x8x128xf32>
    %62 = vector.shape_cast %61 : vector<1x8x128xf32> to vector<8x128xf32>
    %63 = vector.shape_cast %60 : vector<8x128xf32> to vector<1x8x128xf32>
    tpu.vector_store %arg6[%c3_36, %c0_37, %c0_38], %63 {strides = array<i32>} : memref<4x8x128xf32, #tpu.memory_space<vmem>>, vector<1x8x128xf32>,
    %c0_i32_39 = arith.constant 0 : i32
    %64 = arith.cmpi eq, %arg2, %c0_i32_39 : i32
    %65 = arith.extui %64 : i1 to i32
    %c0_i32_40 = arith.constant 0 : i32
    %66 = arith.cmpi ne, %65, %c0_i32_40 : i32
    scf.if %66 {
      %c0_41 = arith.constant 0 : index
      %c0_42 = arith.constant 0 : index
      %c0_43 = arith.constant 0 : index
      %67 = vector.load %arg6[%c0_41, %c0_42, %c0_43] : memref<4x8x128xf32, #tpu.memory_space<vmem>>, vector<1x8x128xf32>
      %68 = vector.shape_cast %67 : vector<1x8x128xf32> to vector<8x128xf32>
      %69 = vector.shape_cast %68 : vector<8x128xf32> to vector<1x8x128xf32>
      %cst_44 = arith.constant dense<0.000000e+00> : vector<1xf32>
      %70 = vector.multi_reduction <add>, %69, %cst_44 [1, 2] : vector<1x8x128xf32> to vector<1xf32>
      %71 = vector.shape_cast %70 : vector<1xf32> to vector<1x1x1xf32>
      %72 = vector.extract %71[0, 0, 0] : f32 from vector<1x1x1xf32>
      %c1_45 = arith.constant 1 : index
      %c0_46 = arith.constant 0 : index
      %c0_47 = arith.constant 0 : index
      %73 = vector.load %arg6[%c1_45, %c0_46, %c0_47] : memref<4x8x128xf32, #tpu.memory_space<vmem>>, vector<1x8x128xf32>
      %74 = vector.shape_cast %73 : vector<1x8x128xf32> to vector<8x128xf32>
      %75 = vector.shape_cast %74 : vector<8x128xf32> to vector<1x8x128xf32>
      %cst_48 = arith.constant dense<0.000000e+00> : vector<1xf32>
      %76 = vector.multi_reduction <add>, %75, %cst_48 [1, 2] : vector<1x8x128xf32> to vector<1xf32>
      %77 = vector.shape_cast %76 : vector<1xf32> to vector<1x1x1xf32>
      %78 = vector.extract %77[0, 0, 0] : f32 from vector<1x1x1xf32>
      %c2_49 = arith.constant 2 : index
      %c0_50 = arith.constant 0 : index
      %c0_51 = arith.constant 0 : index
      %79 = vector.load %arg6[%c2_49, %c0_50, %c0_51] : memref<4x8x128xf32, #tpu.memory_space<vmem>>, vector<1x8x128xf32>
      %80 = vector.shape_cast %79 : vector<1x8x128xf32> to vector<8x128xf32>
      %81 = vector.shape_cast %80 : vector<8x128xf32> to vector<1x8x128xf32>
      %cst_52 = arith.constant dense<0.000000e+00> : vector<1xf32>
      %82 = vector.multi_reduction <add>, %81, %cst_52 [1, 2] : vector<1x8x128xf32> to vector<1xf32>
      %83 = vector.shape_cast %82 : vector<1xf32> to vector<1x1x1xf32>
      %84 = vector.extract %83[0, 0, 0] : f32 from vector<1x1x1xf32>
      %c3_53 = arith.constant 3 : index
      %c0_54 = arith.constant 0 : index
      %c0_55 = arith.constant 0 : index
      %85 = vector.load %arg6[%c3_53, %c0_54, %c0_55] : memref<4x8x128xf32, #tpu.memory_space<vmem>>, vector<1x8x128xf32>
      %86 = vector.shape_cast %85 : vector<1x8x128xf32> to vector<8x128xf32>
      %87 = vector.shape_cast %86 : vector<8x128xf32> to vector<1x8x128xf32>
      %cst_56 = arith.constant dense<0.000000e+00> : vector<1xf32>
      %88 = vector.multi_reduction <add>, %87, %cst_56 [1, 2] : vector<1x8x128xf32> to vector<1xf32>
      %89 = vector.shape_cast %88 : vector<1xf32> to vector<1x1x1xf32>
      %90 = vector.extract %89[0, 0, 0] : f32 from vector<1x1x1xf32>
      %91 = tpu.iota {dimensions = array<i32: 0>} : vector<8x128xi32>
      %c0_i32_57 = arith.constant 0 : i32
      %92 = vector.broadcast %c0_i32_57 : i32 to vector<8x128xi32>
      %93 = arith.cmpi eq, %91, %92 : vector<8x128xi32>
      %cst_58 = arith.constant 0.000000e+00 : f32
      %94 = vector.broadcast %72 : f32 to vector<8x128xf32>
      %95 = vector.broadcast %cst_58 : f32 to vector<8x128xf32>
      %96 = arith.select %93, %94, %95 : vector<8x128xi1>, vector<8x128xf32>
      %c1_i32 = arith.constant 1 : i32
      %97 = vector.broadcast %c1_i32 : i32 to vector<8x128xi32>
      %98 = arith.cmpi eq, %91, %97 : vector<8x128xi32>
      %cst_59 = arith.constant 0.000000e+00 : f32
      %99 = vector.broadcast %78 : f32 to vector<8x128xf32>
      %100 = vector.broadcast %cst_59 : f32 to vector<8x128xf32>
      %101 = arith.select %98, %99, %100 : vector<8x128xi1>, vector<8x128xf32>
      %102 = arith.addf %96, %101 : vector<8x128xf32>
      %c2_i32 = arith.constant 2 : i32
      %103 = vector.broadcast %c2_i32 : i32 to vector<8x128xi32>
      %104 = arith.cmpi eq, %91, %103 : vector<8x128xi32>
      %cst_60 = arith.constant 0.000000e+00 : f32
      %105 = vector.broadcast %84 : f32 to vector<8x128xf32>
      %106 = vector.broadcast %cst_60 : f32 to vector<8x128xf32>
      %107 = arith.select %104, %105, %106 : vector<8x128xi1>, vector<8x128xf32>
      %108 = arith.addf %102, %107 : vector<8x128xf32>
      %c3_i32 = arith.constant 3 : i32
      %109 = vector.broadcast %c3_i32 : i32 to vector<8x128xi32>
      %110 = arith.cmpi eq, %91, %109 : vector<8x128xi32>
      %cst_61 = arith.constant 0.000000e+00 : f32
      %111 = vector.broadcast %90 : f32 to vector<8x128xf32>
      %112 = vector.broadcast %cst_61 : f32 to vector<8x128xf32>
      %113 = arith.select %110, %111, %112 : vector<8x128xi1>, vector<8x128xf32>
      %114 = arith.addf %108, %113 : vector<8x128xf32>
      %115 = vector.shape_cast %114 : vector<8x128xf32> to vector<1x1x8x128xf32>
      %c0_62 = arith.constant 0 : index
      %c0_63 = arith.constant 0 : index
      %c0_64 = arith.constant 0 : index
      %c0_65 = arith.constant 0 : index
      %116 = vector.load %arg5[%c0_62, %c0_63, %c0_64, %c0_65] : memref<1x1x8x128xf32, #tpu.memory_space<vmem>>, vector<1x1x8x128xf32>
      tpu.vector_store %arg5[%c0_62, %c0_63, %c0_64, %c0_65], %115 {strides = array<i32>} : memref<1x1x8x128xf32, #tpu.memory_space<vmem>>, vector<1x1x8x128xf32>,
    } else {
    }
    return
  }
  func.func @transform_0(%arg0: i32, %arg1: i32, %arg2: i32) -> (i32, i32, i32) {
    %c1_i32 = arith.constant 1 : i32
    %0 = arith.muli %arg1, %c1_i32 : i32
    %1 = arith.addi %0, %arg2 : i32
    %c0_i32 = arith.constant 0 : i32
    %c0_i32_0 = arith.constant 0 : i32
    return %arg0, %1, %c0_i32 : i32, i32, i32
  }
  func.func @transform_1(%arg0: i32, %arg1: i32, %arg2: i32) -> (i32, i32, i32) {
    %c1_i32 = arith.constant 1 : i32
    %0 = arith.muli %arg1, %c1_i32 : i32
    %1 = arith.addi %0, %arg2 : i32
    %c0_i32 = arith.constant 0 : i32
    %c0_i32_0 = arith.constant 0 : i32
    return %arg0, %1, %c0_i32 : i32, i32, i32
  }
  func.func @transform_2(%arg0: i32, %arg1: i32, %arg2: i32) -> (i32, i32, i32, i32) {
    %c0_i32 = arith.constant 0 : i32
    %c0_i32_0 = arith.constant 0 : i32
    %c0_i32_1 = arith.constant 0 : i32
    return %arg0, %arg1, %c0_i32, %c0_i32_0 : i32, i32, i32, i32
  }
}

</mosaic_0001>

<llo_original>
// kernel: tpu_custom_call.1
$region0: #{tpu_custom_call.1}
  #allocation0 [shape = 'u32[]', space=smem, size = 0x4, offset = 0x4, fixed_abs, tag = 'smem constant byte address 0x4 - core index']
  #allocation1 [shape = 'u32[144,128]{1,0:T(1,128)}', space=vmem, size = 0x12000, scoped, tag = 'internal scratch']
  #allocation2 [shape = 'f32[4,8,128]{2,1,0:T(8,128)}', space=vmem, size = 0x4000, scoped, tag = 'scratch operand']
  %s0 = inlined_call_operand.hbm [shape: f32[2,8,128], index: 0, kind: input, shape index: {}]
  %s1 = inlined_call_operand.hbm [shape: f32[2,8,128], index: 1, kind: input, shape index: {}]
  %s2 = inlined_call_operand.hbm [shape: f32[2,1,8,128], index: 2, kind: output, shape index: {}]
  %s3 = sld [smem:[#allocation0]]
  $region57: #{tpu_custom_call.1} parent=0
    _
  %s5 = ssub.s32 1, %s3
  %s6 = scalar_select 0, %s5, %s3
  $region1: #{tpu_custom_call.1} parent=0
    #allocation3 [shape = 'u8[8192]{0}', space=vmem, size = 0x2000, scoped, tag = 'input window, operand 0']
    #allocation4 [shape = 's32[2]{0}', space=sflag, size = 0x8, scoped, tag = 'scoped memory for tpu_custom_call.1']
    #allocation5 [shape = 's32[2]{0}', space=sflag, size = 0x8, scoped, tag = 'scoped memory for tpu_custom_call.1']
    #allocation6 [shape = 'u8[8192]{0}', space=vmem, size = 0x2000, scoped, tag = 'input window, operand 1']
    #allocation7 [shape = 's32[2]{0}', space=sflag, size = 0x8, scoped, tag = 'scoped memory for tpu_custom_call.1']
    #allocation8 [shape = 'u8[8192]{0}', space=vmem, size = 0x2000, scoped, tag = 'output window, operand 0']
    %7 = vsyncpa [#allocation4], 0
    %s8 = scalar_lea.sflag [#allocation4], 1
    %9 = vsyncpa %s8, 0
    %10 = vsyncpa [#allocation7], 0
    %s11 = scalar_lea.sflag [#allocation7], 1
    %12 = vsyncpa %s11, 0
    %13 = vsyncpa [#allocation5], 0
    %s14 = scalar_lea.sflag [#allocation5], 1
    %15 = vsyncpa %s14, 0
    loop: start=0, step=1, limit=4
    $region2: #{tpu_custom_call.1} parent=1 // loop_pre_header
      _
    $region3: #{tpu_custom_call.1} parent=1 // loop_header
      %s17 = sphi 0, %s21
      %p18 = scmp.ge.s32.totalorder %s17, 4
      %s24 = sphi 0, %s43
      %s25 = sphi 0, %s39
      %s26 = sphi 0, %s35
      %s27 = sphi 0, %s24
      %s28 = sphi 0, %s25
      %s29 = sphi 0, %s26
      %s30 = sphi 0, %s27
      %s31 = sphi 0, %s28
      %s32 = sphi 0, %s29
      %s50 = sphi 0, %s52
      %s53 = sphi 0, %s50
      %s54 = sphi 0, %s53
      %s70 = sphi 0, %s54
      %s80 = sphi 0, %s82
      %s83 = sphi 0, %s80
      %s84 = sphi 0, %s83
      %s100 = sphi 0, %s84
      %s108 = sphi 0, %s110
      %s111 = sphi 0, %s108
      %s112 = sphi 0, %s111
      %s128 = sphi 0, %s112
    $region4: #{tpu_custom_call.1} parent=1 // loop_header_branch
      %20 = sbr.rel (%p18) target = $region8
    $region5: #{tpu_custom_call.1} parent=1 // loop_body
      %s22 = ssub.s32 %s17, 1
      %s23 = ssub.s32 %s17, 2
      %s33 = sadd.s32 1, %s26
      %p34 = scmp.ge.s32.totalorder %s33, 1
      %s35 = scalar_select %p34, 0, %s33
      %s36 = sadd.s32 1, %s25
      %s37 = scalar_select %p34, %s36, %s25
      %p38 = scmp.ge.s32.totalorder %s37, 1
      %s39 = scalar_select %p38, 0, %s37
      %s40 = sadd.s32 1, %s24
      %s41 = scalar_select %p38, %s40, %s24
      %p42 = scmp.ge.s32.totalorder %s41, 2
      %s43 = scalar_select %p42, 0, %s41
      %s44 = sadd.s32 %s25, %s26
      %s45 = sadd.s32 %s39, %s35
      %s46 = ssub.s32 %s24, %s43
      %s47 = ssub.s32 %s44, %s45
      %s48 = sor.u32 %s46, %s47
      %p49 = scmp.eq.s32.totalorder %s48, 0
      %s51 = sadd.s32 %s50, 1
      %s52 = scalar_select %p49, %s50, %s51
      %p55 = pneg %p49
      %p56 = scmp.eq.s32.totalorder %s17, 1
      %p57 = por %p55, %p56
      %p58 = scmp.ne.s32.totalorder %s50, %s53
      %p59 = scmp.eq.s32.totalorder %s17, 0
      %p60 = por %p58, %p59
      %p61 = scmp.ne.s32.totalorder %s50, %s53
      %p62 = scmp.eq.s32.totalorder %s22, 1
      %p63 = por %p61, %p62
      %p64 = scmp.ne.s32.totalorder %s53, %s54
      %p65 = scmp.eq.s32.totalorder %s22, 0
      %p66 = por %p64, %p65
      %p67 = scmp.ne.s32.totalorder %s53, %s54
      %p68 = scmp.eq.s32.totalorder %s23, 1
      %p69 = por %p67, %p68
      %p71 = scmp.ne.s32.totalorder %s54, %s70
      %p72 = scmp.eq.s32.totalorder %s23, 0
      %p73 = por %p71, %p72
      %s74 = sadd.s32 %s25, %s26
      %s75 = sadd.s32 %s39, %s35
      %s76 = ssub.s32 %s24, %s43
      %s77 = ssub.s32 %s74, %s75
      %s78 = sor.u32 %s76, %s77
      %p79 = scmp.eq.s32.totalorder %s78, 0
      %s81 = sadd.s32 %s80, 1
      %s82 = scalar_select %p79, %s80, %s81
      %p85 = pneg %p79
      %p86 = scmp.eq.s32.totalorder %s17, 1
      %p87 = por %p85, %p86
      %p88 = scmp.ne.s32.totalorder %s80, %s83
      %p89 = scmp.eq.s32.totalorder %s17, 0
      %p90 = por %p88, %p89
      %p91 = scmp.ne.s32.totalorder %s80, %s83
      %p92 = scmp.eq.s32.totalorder %s22, 1
      %p93 = por %p91, %p92
      %p94 = scmp.ne.s32.totalorder %s83, %s84
      %p95 = scmp.eq.s32.totalorder %s22, 0
      %p96 = por %p94, %p95
      %p97 = scmp.ne.s32.totalorder %s83, %s84
      %p98 = scmp.eq.s32.totalorder %s23, 1
      %p99 = por %p97, %p98
      %p101 = scmp.ne.s32.totalorder %s84, %s100
      %p102 = scmp.eq.s32.totalorder %s23, 0
      %p103 = por %p101, %p102
      %s104 = ssub.s32 %s24, %s43
      %s105 = ssub.s32 %s25, %s39
      %s106 = sor.u32 %s104, %s105
      %p107 = scmp.eq.s32.totalorder %s106, 0
      %s109 = sadd.s32 %s108, 1
      %s110 = scalar_select %p107, %s108, %s109
      %p113 = pneg %p107
      %p114 = scmp.eq.s32.totalorder %s17, 1
      %p115 = por %p113, %p114
      %p116 = scmp.ne.s32.totalorder %s108, %s111
      %p117 = scmp.eq.s32.totalorder %s17, 0
      %p118 = por %p116, %p117
      %p119 = scmp.ne.s32.totalorder %s108, %s111
      %p120 = scmp.eq.s32.totalorder %s22, 1
      %p121 = por %p119, %p120
      %p122 = scmp.ne.s32.totalorder %s111, %s112
      %p123 = scmp.eq.s32.totalorder %s22, 0
      %p124 = por %p122, %p123
      %p125 = scmp.ne.s32.totalorder %s111, %s112
      %p126 = scmp.eq.s32.totalorder %s23, 1
      %p127 = por %p125, %p126
      %p129 = scmp.ne.s32.totalorder %s112, %s128
      %p130 = scmp.eq.s32.totalorder %s23, 0
      %p131 = por %p129, %p130
      %p132 = scmp.le.s32.totalorder 1, %s17
      %p133 = scmp.lt.s32.totalorder %s17, 3
      %p134 = pnand %p132, %p133
      %p135 = pneg %p134
      // Predicated region
      $region9: #{tpu_custom_call.1} parent=5 // pred_check
        _
      $region10: #{tpu_custom_call.1} parent=5 // pred_check_branch
        %137 = sbr.rel (%p134) target = $region12
      $region11: #{tpu_custom_call.1} parent=5 // pred_region
        %s138 = ssub.s32 %s17, 1
      $region12: #{tpu_custom_call.1} parent=5 // pred_fallthru
        _
      %p139 = scmp.lt.s32.totalorder %s17, 2
      // Predicated region
      $region13: #{tpu_custom_call.1} parent=5 // pred_check
        %p140 = pneg %p139
      $region14: #{tpu_custom_call.1} parent=5 // pred_check_branch
        %142 = sbr.rel (%p140) target = $region16
      $region15: #{tpu_custom_call.1} parent=5 // pred_region
        // Predicated region
        $region17: #{tpu_custom_call.1} parent=15 // pred_check
          %p143 = pneg %p60
        $region18: #{tpu_custom_call.1} parent=15 // pred_check_branch
          %145 = sbr.rel (%p143) target = $region20
        $region19: #{tpu_custom_call.1} parent=15 // pred_region
          %s146 = sand.u32 %s50, 1
          %s147 = scalar_lea.sflag [#allocation4], %s146
          %s148 = sand.u32 %s50, 1
          %s149 = smul.addr %s148, 8
          %s150 = scalar_lea.vmem [#allocation3], %s149
          %s151 = sadd.s32 %s25, %s26
          %s153 = ssub.s32 128, 128
          %154 = vsyncadd %s147, %s153
          %s155 = sadd.s32 %s151, %s24
          %s156 = smul.addr %s155, 128
          %s157 = scalar_lea.hbm %s0, %s156
          %s159 = sshll.u32 %s150, 4
          %s160 = int_to_ptr.vmem [resolvable:$true] %s159
          %162 = dma.hbm_to_vmem [thread:$0]  %s157, 128, %s160, %s147
        $region20: #{tpu_custom_call.1} parent=15 // pred_fallthru
          _
        // Predicated region
        $region21: #{tpu_custom_call.1} parent=15 // pred_check
          %p163 = pneg %p90
        $region22: #{tpu_custom_call.1} parent=15 // pred_check_branch
          %165 = sbr.rel (%p163) target = $region24
        $region23: #{tpu_custom_call.1} parent=15 // pred_region
          %s166 = sand.u32 %s80, 1
          %s167 = scalar_lea.sflag [#allocation7], %s166
          %s168 = sand.u32 %s80, 1
          %s169 = smul.addr %s168, 8
          %s170 = scalar_lea.vmem [#allocation6], %s169
          %s171 = sadd.s32 %s25, %s26
          %s173 = ssub.s32 128, 128
          %174 = vsyncadd %s167, %s173
          %s175 = sadd.s32 %s171, %s24
          %s176 = smul.addr %s175, 128
          %s177 = scalar_lea.hbm %s1, %s176
          %s179 = sshll.u32 %s170, 4
          %s180 = int_to_ptr.vmem [resolvable:$true] %s179
          %182 = dma.hbm_to_vmem [thread:$0]  %s177, 128, %s180, %s167
        $region24: #{tpu_custom_call.1} parent=15 // pred_fallthru
          _
      $region16: #{tpu_custom_call.1} parent=5 // pred_fallthru
        _
      %p183 = scmp.le.s32.totalorder 1, %s17
      %p184 = scmp.lt.s32.totalorder %s17, 3
      %p185 = pnand %p183, %p184
      %p186 = pneg %p185
      // Predicated region
      $region25: #{tpu_custom_call.1} parent=5 // pred_check
        _
      $region26: #{tpu_custom_call.1} parent=5 // pred_check_branch
        %188 = sbr.rel (%p185) target = $region28
      $region27: #{tpu_custom_call.1} parent=5 // pred_region
        %s189 = ssub.s32 %s17, 1
        %s190 = sand.u32 %s53, 1
        %s191 = scalar_lea.sflag [#allocation4], %s190
        %s192 = sand.u32 %s53, 1
        %s193 = smul.addr %s192, 8
        %s194 = scalar_lea.vmem [#allocation3], %s193
        // Predicated region
        $region29: #{tpu_custom_call.1} parent=27 // pred_check
          %p195 = pneg %p66
        $region30: #{tpu_custom_call.1} parent=27 // pred_check_branch
          %197 = sbr.rel (%p195) target = $region32
        $region31: #{tpu_custom_call.1} parent=27 // pred_region
          %198 = dma.done %s191, 128
        $region32: #{tpu_custom_call.1} parent=27 // pred_fallthru
          _
        %s199 = sand.u32 %s83, 1
        %s200 = scalar_lea.sflag [#allocation7], %s199
        %s201 = sand.u32 %s83, 1
        %s202 = smul.addr %s201, 8
        %s203 = scalar_lea.vmem [#allocation6], %s202
        // Predicated region
        $region33: #{tpu_custom_call.1} parent=27 // pred_check
          %p204 = pneg %p96
        $region34: #{tpu_custom_call.1} parent=27 // pred_check_branch
          %206 = sbr.rel (%p204) target = $region36
        $region35: #{tpu_custom_call.1} parent=27 // pred_region
          %207 = dma.done %s200, 128
        $region36: #{tpu_custom_call.1} parent=27 // pred_fallthru
          _
        %s208 = sand.u32 %s53, 1
        %s209 = scalar_lea.sflag [#allocation4], %s208
        %s210 = sand.u32 %s53, 1
        %s211 = smul.addr %s210, 8
        %s212 = scalar_lea.vmem [#allocation3], %s211
        %p213 = pneg %p66
        %p214 = pneg %p63
        %s215 = sand.u32 %s83, 1
        %s216 = scalar_lea.sflag [#allocation7], %s215
        %s217 = sand.u32 %s83, 1
        %s218 = smul.addr %s217, 8
        %s219 = scalar_lea.vmem [#allocation6], %s218
        %p220 = pneg %p96
        %p221 = pneg %p93
        %p222 = pneg %p124
        %p223 = pneg %p121
        %s224 = sand.u32 %s111, 1
        %s225 = scalar_lea.sflag [#allocation5], %s224
        %s226 = sand.u32 %s111, 1
        %s227 = smul.addr %s226, 8
        %s228 = scalar_lea.vmem [#allocation8], %s227
        %s229 = sadd.s32 %s28, %s29
        %s230 = sadd.s32 %s28, %s29
        %p231 = scmp.eq.s32.totalorder %s29, 0
        // Predicated region
        $region37: #{tpu_custom_call.1} parent=27 // pred_check
          %p232 = pneg %p231
        $region38: #{tpu_custom_call.1} parent=27 // pred_check_branch
          %234 = sbr.rel (%p232) target = $region40
        $region39: #{tpu_custom_call.1} parent=27 // pred_region
          %235 = vst [vmem:[#allocation2] sm:$0xff] 0.0
          %236 = vst [vmem:[#allocation2 + $0x8] sm:$0xff] 0.0
          %237 = vst [vmem:[#allocation2 + $0x10] sm:$0xff] 0.0
          %238 = vst [vmem:[#allocation2 + $0x18] sm:$0xff] 0.0
        $region40: #{tpu_custom_call.1} parent=27 // pred_fallthru
          _
        %v239 = vld [vmem:[%s194] sm:$0xff]
        %v240 = vld [vmem:[%s203] sm:$0xff]
        %vm241 = vcmp.gt.f32.partialorder %v240, 0.0
        %vm242 = vcmp.eq.f32.partialorder %v240, 0.0
        %v243 = vmax.f32 %v239, 1e-06
        %v244 = vmin.f32 %v243, 0.999999
        %v245 = vsub.f32 1.0, %v244
        %v246 = vsel %vm241, %v244, %v245
        %v247 = vsel %vm241, %v240, 1.0
        %v248 = vlog2.pop %v246
        %v249 = vmul.f32 %v248, 0.6931472
        %v250 = vsub.f32 0.0, %v249
        %v251 = vmul.f32 %v250, %v247
        %v252 = vld [vmem:[#allocation2] sm:$0xff]
        %v253 = vsel %vm241, %v251, 0.0
        %v254 = vadd.f32 %v253, 0.0
        %v255 = vadd.f32 %v252, %v254
        %256 = vst [vmem:[#allocation2] sm:$0xff] %v255
        %s257 = scalar_lea.vmem [#allocation2], 8
        %v258 = vld [vmem:[%s257] sm:$0xff]
        %v259 = vsel %vm241, 1, 0
        %v260 = vcvt.s32.f32 %v259
        %v261 = vadd.f32 %v260, 0.0
        %v262 = vadd.f32 %v258, %v261
        %263 = vst [vmem:[%s257] sm:$0xff] %v262
        %s264 = scalar_lea.vmem [#allocation2], 16
        %v265 = vld [vmem:[%s264] sm:$0xff]
        %v266 = vsel %vm242, %v251, 0.0
        %v267 = vadd.f32 %v266, 0.0
        %v268 = vadd.f32 %v265, %v267
        %269 = vst [vmem:[%s264] sm:$0xff] %v268
        %s270 = scalar_lea.vmem [#allocation2], 24
        %v271 = vld [vmem:[%s270] sm:$0xff]
        %v272 = vsel %vm242, 1, 0
        %v273 = vcvt.s32.f32 %v272
        %v274 = vadd.f32 %v273, 0.0
        %v275 = vadd.f32 %v271, %v274
        %276 = vst [vmem:[%s270] sm:$0xff] %v275
        // Predicated region
        $region41: #{tpu_custom_call.1} parent=27 // pred_check
          %p277 = pneg %p231
        $region42: #{tpu_custom_call.1} parent=27 // pred_check_branch
          %279 = sbr.rel (%p277) target = $region44
        $region43: #{tpu_custom_call.1} parent=27 // pred_region
          %v280 = vld [vmem:[#allocation2] sm:$0xff]
          %281 = vadd.xlane.f32.xlu0 %v280
          %v282 = vpop.xlane.xlu0 %281
          %v283 = vrot.slane %v282, 4
          %v284 = vadd.f32 %v282, %v283
          %v285 = vrot.slane %v284, 2
          %v286 = vadd.f32 %v284, %v285
          %v287 = vrot.slane %v286, 1
          %v288 = vadd.f32 %v286, %v287
          %s289 = vtos %v288
          %v290 = vld [vmem:[%s257] sm:$0xff]
          %291 = vadd.xlane.f32.xlu0 %v290
          %v292 = vpop.xlane.xlu0 %291
          %v293 = vrot.slane %v292, 4
          %v294 = vadd.f32 %v292, %v293
          %v295 = vrot.slane %v294, 2
          %v296 = vadd.f32 %v294, %v295
          %v297 = vrot.slane %v296, 1
          %v298 = vadd.f32 %v296, %v297
          %s299 = vtos %v298
          %v300 = vld [vmem:[%s264] sm:$0xff]
          %301 = vadd.xlane.f32.xlu0 %v300
          %v302 = vpop.xlane.xlu0 %301
          %v303 = vrot.slane %v302, 4
          %v304 = vadd.f32 %v302, %v303
          %v305 = vrot.slane %v304, 2
          %v306 = vadd.f32 %v304, %v305
          %v307 = vrot.slane %v306, 1
          %v308 = vadd.f32 %v306, %v307
          %s309 = vtos %v308
          %v310 = vld [vmem:[%s270] sm:$0xff]
          %311 = vadd.xlane.f32.xlu0 %v310
          %v312 = vpop.xlane.xlu0 %311
          %v313 = vrot.slane %v312, 4
          %v314 = vadd.f32 %v312, %v313
          %v315 = vrot.slane %v314, 2
          %v316 = vadd.f32 %v314, %v315
          %v317 = vrot.slane %v316, 1
          %v318 = vadd.f32 %v316, %v317
          %s319 = vtos %v318
          %v320 = vlaneseq
          %v321 = vshrl.u32 %v320, 7
          %vm322 = vcmp.eq.s32.totalorder %v321, 0
          %v323 = vstv %s289
          %v324 = vsel %vm322, %v323, 0.0
          %vm325 = vcmp.eq.s32.totalorder %v321, 1
          %v326 = vstv %s299
          %v327 = vsel %vm325, %v326, 0.0
          %v328 = vadd.f32 %v324, %v327
          %vm329 = vcmp.eq.s32.totalorder %v321, 2
          %v330 = vstv %s309
          %v331 = vsel %vm329, %v330, 0.0
          %v332 = vadd.f32 %v328, %v331
          %vm333 = vcmp.eq.s32.totalorder %v321, 3
          %v334 = vstv %s319
          %v335 = vsel %vm333, %v334, 0.0
          %v336 = vadd.f32 %v332, %v335
          %337 = vst [vmem:[%s228] sm:$0xff] %v336
        $region44: #{tpu_custom_call.1} parent=27 // pred_fallthru
          _
        %s338 = sand.u32 %s111, 1
        %s339 = scalar_lea.sflag [#allocation5], %s338
        %s340 = sand.u32 %s111, 1
        %s341 = smul.addr %s340, 8
        %s342 = scalar_lea.vmem [#allocation8], %s341
        // Predicated region
        $region45: #{tpu_custom_call.1} parent=27 // pred_check
          %p343 = pneg %p121
        $region46: #{tpu_custom_call.1} parent=27 // pred_check_branch
          %345 = sbr.rel (%p343) target = $region48
        $region47: #{tpu_custom_call.1} parent=27 // pred_region
          %s347 = ssub.s32 128, 128
          %348 = vsyncadd %s339, %s347
          %s349 = sadd.s32 %s28, %s27
          %s350 = smul.addr %s349, 128
          %s351 = scalar_lea.hbm %s2, %s350
          %s353 = sshll.u32 %s342, 4
          %s354 = int_to_ptr.vmem [resolvable:$true] %s353
          %356 = dma.vmem_to_hbm [thread:$0]  %s354, 128, %s351, %s339
        $region48: #{tpu_custom_call.1} parent=27 // pred_fallthru
          _
      $region28: #{tpu_custom_call.1} parent=5 // pred_fallthru
        _
      %p357 = scmp.le.s32.totalorder 2, %s17
      // Predicated region
      $region49: #{tpu_custom_call.1} parent=5 // pred_check
        %p358 = pneg %p357
      $region50: #{tpu_custom_call.1} parent=5 // pred_check_branch
        %360 = sbr.rel (%p358) target = $region52
      $region51: #{tpu_custom_call.1} parent=5 // pred_region
        %s361 = ssub.s32 %s17, 2
        // Predicated region
        $region53: #{tpu_custom_call.1} parent=51 // pred_check
          %p362 = pneg %p127
        $region54: #{tpu_custom_call.1} parent=51 // pred_check_branch
          %364 = sbr.rel (%p362) target = $region56
        $region55: #{tpu_custom_call.1} parent=51 // pred_region
          %s365 = sand.u32 %s112, 1
          %s366 = scalar_lea.sflag [#allocation5], %s365
          %s367 = sand.u32 %s112, 1
          %s368 = smul.addr %s367, 8
          %s369 = scalar_lea.vmem [#allocation8], %s368
          %370 = dma.done %s366, 128
        $region56: #{tpu_custom_call.1} parent=51 // pred_fallthru
          _
      $region52: #{tpu_custom_call.1} parent=5 // pred_fallthru
        _
    $region6: #{tpu_custom_call.1} parent=1 // loop_footer
      %s21 = sadd.s32 1, %s17
    $region7: #{tpu_custom_call.1} parent=1 // loop_footer_branch
      %16 = sbr.rel target = $region3
    $region8: #{tpu_custom_call.1} parent=1 // loop_exit
      _
    %371 = vsyncpa [#allocation4], 1
    %s372 = scalar_lea.sflag [#allocation4], 1
    %373 = vsyncpa %s372, 1
    %374 = vsyncpa [#allocation7], 1
    %s375 = scalar_lea.sflag [#allocation7], 1
    %376 = vsyncpa %s375, 1
    %377 = vsyncpa [#allocation5], 1
    %s378 = scalar_lea.sflag [#allocation5], 1
    %379 = vsyncpa %s378, 1

</llo_original>
